<compile_context>
chip_gen: v7x
topology: tpu7x:2x2x1
jax: 0.10.0
libtpu: 0.0.40
codegen_flags: <defaults>
</compile_context>

<pallas_src>
import jax
import jax.numpy as jnp
from jax.experimental import pallas as pl
from jax.experimental.pallas import tpu as pltpu


def _round_up(x, m):
    return (x + m - 1) // m * m


# --------------------------------------------------------------------------
# Kernel body
# --------------------------------------------------------------------------
def _swiglu_mlp_kernel(x_ref, w1_ref, w2_ref, w3_ref, o_ref, acc_ref):
    """One (token-tile i, hidden-tile h) grid step.

    x_ref:  (tm, E)    w1_ref / w2_ref: (E, th)    w3_ref: (th, E)
    o_ref:  (tm, E)    acc_ref: (tm, E) f32 scratch, resident across the H axis.
    """
    h = pl.program_id(1)

    @pl.when(h == 0)
    def _():
        acc_ref[...] = jnp.zeros_like(acc_ref)

    x = x_ref[...]
    h1 = jnp.dot(x, w1_ref[...], preferred_element_type=jnp.float32)
    h2 = jnp.dot(x, w2_ref[...], preferred_element_type=jnp.float32)
    gated = (h1 * jax.nn.sigmoid(h1)) * h2          # SiLU gate in f32 (VPU/EUP)
    # Deliberate precision choice: gate output is cast to the weight dtype
    # (bf16) before the down-projection; accumulation stays f32.
    acc_ref[...] += jnp.dot(gated.astype(w3_ref.dtype), w3_ref[...],
                            preferred_element_type=jnp.float32)

    @pl.when(h == pl.num_programs(1) - 1)
    def _():
        o_ref[...] = acc_ref[...].astype(o_ref.dtype)


# --------------------------------------------------------------------------
# Tile / VMEM configuration
# --------------------------------------------------------------------------
def _tpu_generation():
    try:
        kind = jax.devices()[0].device_kind.lower()
    except Exception:
        return "unknown"
    if "v7" in kind:
        return "v7x"
    if "v6" in kind:
        return "v6e"
    if "v5 lite" in kind or "v5e" in kind or "v5litepod" in kind:
        return "v5e"
    return "unknown"


def _vmem_bytes_estimate(tm, th, E, bpe, wbuf=2):
    act = 2 * tm * E * bpe                       # x double buffer
    out = 2 * tm * E * bpe                       # out double buffer
    wts = wbuf * (2 * E * th + th * E) * bpe     # W1, W2, W3 streams
    acc = tm * E * 4                             # f32 accumulator scratch
    tmp = tm * th * (4 + 4 + 4 + 2)              # h1/h2/gated f32 + bf16 cast
    return act + out + wts + acc + tmp


def _choose_config(T, E, H, bpe):
    gen = _tpu_generation()
    if gen == "v6e":
        tm_d, th_d, cap = 1024, 512, 112 << 20   # 128 MiB VMEM: go big on tm
    elif gen == "v7x":
        tm_d, th_d, cap = 512, 256, 56 << 20     # 64 MiB/TC: trade th for tm
    elif gen == "v5e":
        tm_d, th_d, cap = 256, 512, 100 << 20    # tm=256 already at roofline
    else:
        tm_d, th_d, cap = 256, 512, 56 << 20     # conservative fallback
    try:
        phys = int(pltpu.get_tpu_info().vmem_capacity_bytes)
        cap = min(cap, phys - (8 << 20))
    except Exception:
        pass

    # Hidden tile: must divide H so weights need no per-call padding.
    th = None
    for cand in (th_d, 512, 256, 128):
        if cand <= th_d and cand <= H and H % cand == 0:
            th = cand
            break
    pad_h = th is None
    if pad_h:                     # rare fallback: H not a multiple of 128
        th = 128
    Hp = _round_up(H, th)

    # Token tile.
    tm = min(tm_d, _round_up(T, 8))
    if gen == "v7x" and T >= 512:
        # keep at least two T tiles so both TensorCores get work
        tm = min(tm, _round_up((T + 1) // 2, 128))
    if tm >= 512 and gen == "v6e":
        tm = tm // 256 * 256       # fill the 2x256x256 MXU
    elif tm >= 128:
        tm = tm // 128 * 128
    else:
        tm = max(8, _round_up(tm, 8))

    # Shrink until the working set (incl. MXU-output temporaries) fits VMEM.
    while _vmem_bytes_estimate(tm, th, E, bpe) > cap and tm > 128:
        tm = max(128, (tm // 2) // 8 * 8)
    while (_vmem_bytes_estimate(tm, th, E, bpe) > cap and th > 128
           and H % (th // 2) == 0):
        th = th // 2

    return gen, tm, th, Hp, pad_h, cap


# --------------------------------------------------------------------------
# Wrapper
# --------------------------------------------------------------------------
def mlp_forward(x, w1, w2, w3):
    """SwiGLU MLP forward.  x: (..., E); w1, w2: (E, H); w3: (H, E)."""
    orig_shape = x.shape
    E = orig_shape[-1]
    H = w1.shape[1]
    assert w1.shape == (E, H) and w2.shape == (E, H) and w3.shape == (H, E)

    x2 = x.reshape(-1, E)
    T = x2.shape[0]
    dtype = x2.dtype
    bpe = jnp.dtype(dtype).itemsize

    gen, tm, th, Hp, pad_h, cap = _choose_config(T, E, H, bpe)

    Tp = _round_up(T, tm)
    if Tp != T:
        x2 = jnp.pad(x2, ((0, Tp - T), (0, 0)))
    if pad_h and Hp != H:
        # Zero padding is exact: silu(0) * 0 = 0 and padded W3 rows are zero.
        w1 = jnp.pad(w1, ((0, 0), (0, Hp - H)))
        w2 = jnp.pad(w2, ((0, 0), (0, Hp - H)))
        w3 = jnp.pad(w3, ((0, Hp - H), (0, 0)))

    n_t = Tp // tm
    n_h = Hp // th

    # Deepen weight prefetch only when clearly HBM-bound (small token tile,
    # many hidden tiles) and the extra buffer still fits the VMEM cap.
    wbuf = 3 if (tm <= 256 and n_h >= 4
                 and _vmem_bytes_estimate(tm, th, E, bpe, wbuf=3) <= cap) else 2
    w_kwargs = dict(pipeline_mode=pl.Buffered(3)) if wbuf == 3 else {}

    est = _vmem_bytes_estimate(tm, th, E, bpe, wbuf=wbuf)
    vmem_limit = min(max(int(est * 1.2) + (4 << 20), 32 << 20), cap)

    cost = pl.CostEstimate(
        flops=int(6 * T * E * H),
        transcendentals=int(T * H),
        # x read once, out written once; weights re-streamed once per T tile.
        bytes_accessed=int((x2.size + Tp * E) * bpe
                           + n_t * (w1.size + w2.size + w3.size) * bpe),
    )

    out = pl.pallas_call(
        _swiglu_mlp_kernel,
        out_shape=jax.ShapeDtypeStruct((Tp, E), dtype),
        grid_spec=pltpu.PrefetchScalarGridSpec(
            num_scalar_prefetch=0,
            grid=(n_t, n_h),
            in_specs=[
                pl.BlockSpec((tm, E), lambda i, h: (i, 0)),              # x
                pl.BlockSpec((E, th), lambda i, h: (0, h), **w_kwargs),  # W1
                pl.BlockSpec((E, th), lambda i, h: (0, h), **w_kwargs),  # W2
                pl.BlockSpec((th, E), lambda i, h: (h, 0), **w_kwargs),  # W3
            ],
            out_specs=pl.BlockSpec((tm, E), lambda i, h: (i, 0)),
            scratch_shapes=[pltpu.VMEM((tm, E), jnp.float32)],
        ),
        compiler_params=pltpu.CompilerParams(
            dimension_semantics=("parallel", "arbitrary"),
            vmem_limit_bytes=vmem_limit,
        ),
        cost_estimate=cost,
    )(x2, w1, w2, w3)

    return out[:T].reshape(orig_shape)


def make_mlp_params(key, n_embd, dtype=jnp.bfloat16):
    """Mirror MLP.__init__ shape logic (Linear weights, no bias), transposed."""
    hidden_dim = 4 * n_embd
    n_hidden = int(2 * hidden_dim / 3)
    N = 256
    n_hidden = (n_hidden - 1) // N * N + N
    k1, k2, k3 = jax.random.split(key, 3)
    w1 = (jax.random.normal(k1, (n_embd, n_hidden), jnp.float32) * 0.02).astype(dtype)
    w2 = (jax.random.normal(k2, (n_embd, n_hidden), jnp.float32) * 0.02).astype(dtype)
    w3 = (jax.random.normal(k3, (n_hidden, n_embd), jnp.float32) * 0.02).astype(dtype)
    return w1, w2, w3


if __name__ == "__main__":
    key = jax.random.PRNGKey(0)
    batch, seq, n_embd = 2, 8, 128            # small LLaMAConfig(n_embd=128)
    kx, kp = jax.random.split(key)

    w1, w2, w3 = make_mlp_params(kp, n_embd)  # bf16 weights, n_hidden -> 512
    x = jax.random.normal(kx, (batch, seq, n_embd), jnp.float32).astype(jnp.bfloat16)

    out = mlp_forward(x, w1, w2, w3)          # (B, S, E), handled internally
    jax.block_until_ready(out)

    # Pure-JAX reference (same bf16 operands, f32 math).
    xf = x.astype(jnp.float32)
    w1f, w2f, w3f = (w.astype(jnp.float32) for w in (w1, w2, w3))
    ref = (jax.nn.silu(xf @ w1f) * (xf @ w2f)) @ w3f
    err = float(jnp.max(jnp.abs(out.astype(jnp.float32) - ref)))
    assert jnp.allclose(out.astype(jnp.float32), ref, atol=5e-3, rtol=5e-2), (
        f"mismatch vs reference, max abs err = {err}")

    print("KERNEL_OK")
</pallas_src>

<mosaic_0001>
module attributes {stable_mosaic.version = 11 : i64} {
  func.func @_swiglu_mlp_kernel(%arg0: i32, %arg1: i32, %arg2: memref<16x128xbf16, #tpu.memory_space<vmem>>, %arg3: memref<128x512xbf16, #tpu.memory_space<vmem>>, %arg4: memref<128x512xbf16, #tpu.memory_space<vmem>>, %arg5: memref<512x128xbf16, #tpu.memory_space<vmem>>, %arg6: memref<16x128xbf16, #tpu.memory_space<vmem>>, %arg7: memref<16x128xf32, #tpu.memory_space<vmem>>) attributes {dimension_semantics = [#tpu.dimension_semantics<parallel>, #tpu.dimension_semantics<arbitrary>], iteration_bounds = array<i64: 1, 1>, scalar_prefetch = 0 : i64, scratch_operands = 1 : i64, tpu.core_type = #tpu.core_type<tc>, window_params = [{transform_indices = @transform_0, window_bounds = array<i64: 16, 128>}, {transform_indices = @transform_1, window_bounds = array<i64: 128, 512>}, {transform_indices = @transform_2, window_bounds = array<i64: 128, 512>}, {transform_indices = @transform_3, window_bounds = array<i64: 512, 128>}, {transform_indices = @transform_4, window_bounds = array<i64: 16, 128>}]} {
    %c0_i32 = arith.constant 0 : i32
    %0 = arith.cmpi eq, %arg1, %c0_i32 : i32
    %1 = arith.extui %0 : i1 to i32
    %c0_i32_0 = arith.constant 0 : i32
    %2 = arith.cmpi ne, %1, %c0_i32_0 : i32
    scf.if %2 {
      %cst_17 = arith.constant 0.000000e+00 : f32
      %24 = vector.broadcast %cst_17 : f32 to vector<16x128xf32>
      %c0_18 = arith.constant 0 : index
      %c0_19 = arith.constant 0 : index
      %25 = vector.load %arg7[%c0_18, %c0_19] : memref<16x128xf32, #tpu.memory_space<vmem>>, vector<16x128xf32>
      tpu.vector_store %arg7[%c0_18, %c0_19], %24 {strides = array<i32>} : memref<16x128xf32, #tpu.memory_space<vmem>>, vector<16x128xf32>,
    } else {
    }
    %c0 = arith.constant 0 : index
    %c0_1 = arith.constant 0 : index
    %3 = vector.load %arg2[%c0, %c0_1] : memref<16x128xbf16, #tpu.memory_space<vmem>>, vector<16x128xbf16>
    %c0_2 = arith.constant 0 : index
    %c0_3 = arith.constant 0 : index
    %4 = vector.load %arg3[%c0_2, %c0_3] : memref<128x512xbf16, #tpu.memory_space<vmem>>, vector<128x512xbf16>
    %cst = arith.constant dense<0.000000e+00> : vector<16x512xf32>
    %5 = tpu.matmul %3, %4, %cst {dimension_numbers = #tpu.dot_dimension_numbers<[1], [0], [0], [1], [0, 0, 1, 1], [], []>} : vector<16x128xbf16>, vector<128x512xbf16>, vector<16x512xf32> -> vector<16x512xf32>
    %c0_4 = arith.constant 0 : index
    %c0_5 = arith.constant 0 : index
    %6 = vector.load %arg4[%c0_4, %c0_5] : memref<128x512xbf16, #tpu.memory_space<vmem>>, vector<128x512xbf16>
    %cst_6 = arith.constant dense<0.000000e+00> : vector<16x512xf32>
    %7 = tpu.matmul %3, %6, %cst_6 {dimension_numbers = #tpu.dot_dimension_numbers<[1], [0], [0], [1], [0, 0, 1, 1], [], []>} : vector<16x128xbf16>, vector<128x512xbf16>, vector<16x512xf32> -> vector<16x512xf32>
    %8 = arith.negf %5 : vector<16x512xf32>
    %9 = math.exp %8 : vector<16x512xf32>
    %cst_7 = arith.constant 1.000000e+00 : f32
    %10 = vector.broadcast %cst_7 : f32 to vector<16x512xf32>
    %11 = arith.addf %10, %9 : vector<16x512xf32>
    %12 = arith.divf %10, %11 : vector<16x512xf32>
    %13 = arith.mulf %5, %12 : vector<16x512xf32>
    %14 = arith.mulf %13, %7 : vector<16x512xf32>
    %c0_8 = arith.constant 0 : index
    %c0_9 = arith.constant 0 : index
    %15 = vector.load %arg7[%c0_8, %c0_9] : memref<16x128xf32, #tpu.memory_space<vmem>>, vector<16x128xf32>
    %16 = arith.truncf %14 : vector<16x512xf32> to vector<16x512xbf16>
    %c0_10 = arith.constant 0 : index
    %c0_11 = arith.constant 0 : index
    %17 = vector.load %arg5[%c0_10, %c0_11] : memref<512x128xbf16, #tpu.memory_space<vmem>>, vector<512x128xbf16>
    %cst_12 = arith.constant dense<0.000000e+00> : vector<16x128xf32>
    %18 = tpu.matmul %16, %17, %cst_12 {dimension_numbers = #tpu.dot_dimension_numbers<[1], [0], [0], [1], [0, 0, 1, 1], [], []>} : vector<16x512xbf16>, vector<512x128xbf16>, vector<16x128xf32> -> vector<16x128xf32>
    %19 = arith.addf %15, %18 : vector<16x128xf32>
    %c0_13 = arith.constant 0 : index
    %c0_14 = arith.constant 0 : index
    %20 = vector.load %arg7[%c0_13, %c0_14] : memref<16x128xf32, #tpu.memory_space<vmem>>, vector<16x128xf32>
    tpu.vector_store %arg7[%c0_13, %c0_14], %19 {strides = array<i32>} : memref<16x128xf32, #tpu.memory_space<vmem>>, vector<16x128xf32>,
    %c0_i32_15 = arith.constant 0 : i32
    %21 = arith.cmpi eq, %arg1, %c0_i32_15 : i32
    %22 = arith.extui %21 : i1 to i32
    %c0_i32_16 = arith.constant 0 : i32
    %23 = arith.cmpi ne, %22, %c0_i32_16 : i32
    scf.if %23 {
      %c0_17 = arith.constant 0 : index
      %c0_18 = arith.constant 0 : index
      %24 = vector.load %arg7[%c0_17, %c0_18] : memref<16x128xf32, #tpu.memory_space<vmem>>, vector<16x128xf32>
      %25 = arith.truncf %24 : vector<16x128xf32> to vector<16x128xbf16>
      %c0_19 = arith.constant 0 : index
      %c0_20 = arith.constant 0 : index
      %26 = vector.load %arg6[%c0_19, %c0_20] : memref<16x128xbf16, #tpu.memory_space<vmem>>, vector<16x128xbf16>
      tpu.vector_store %arg6[%c0_19, %c0_20], %25 {strides = array<i32>} : memref<16x128xbf16, #tpu.memory_space<vmem>>, vector<16x128xbf16>,
    } else {
    }
    return
  }
  func.func @transform_0(%arg0: i32, %arg1: i32) -> (i32, i32) {
    %c0_i32 = arith.constant 0 : i32
    %c0_i32_0 = arith.constant 0 : i32
    return %arg0, %c0_i32 : i32, i32
  }
  func.func @transform_1(%arg0: i32, %arg1: i32) -> (i32, i32) {
    %c0_i32 = arith.constant 0 : i32
    %c0_i32_0 = arith.constant 0 : i32
    return %c0_i32, %arg1 : i32, i32
  }
  func.func @transform_2(%arg0: i32, %arg1: i32) -> (i32, i32) {
    %c0_i32 = arith.constant 0 : i32
    %c0_i32_0 = arith.constant 0 : i32
    return %c0_i32, %arg1 : i32, i32
  }
  func.func @transform_3(%arg0: i32, %arg1: i32) -> (i32, i32) {
    %c0_i32 = arith.constant 0 : i32
    %c0_i32_0 = arith.constant 0 : i32
    return %arg1, %c0_i32 : i32, i32
  }
  func.func @transform_4(%arg0: i32, %arg1: i32) -> (i32, i32) {
    %c0_i32 = arith.constant 0 : i32
    %c0_i32_0 = arith.constant 0 : i32
    return %arg0, %c0_i32 : i32, i32
  }
}

</mosaic_0001>

<llo_original>
// kernel: tpu_custom_call.1
$region0: #{tpu_custom_call.1}
  #allocation0 [shape = 'u32[]', space=smem, size = 0x4, offset = 0x4, fixed_abs, tag = 'smem constant byte address 0x4 - core index']
  #allocation1 [shape = 'u32[144,128]{1,0:T(1,128)}', space=vmem, size = 0x12000, scoped, tag = 'internal scratch']
  #allocation2 [shape = 'f32[16,128]{1,0:T(8,128)}', space=vmem, size = 0x2000, scoped, tag = 'scratch operand']
  %s0 = inlined_call_operand.hbm [shape: bf16[16,128], index: 0, kind: input, shape index: {}]
  %s1 = inlined_call_operand.hbm [shape: bf16[128,512], index: 1, kind: input, shape index: {}]
  %s2 = inlined_call_operand.hbm [shape: bf16[128,512], index: 2, kind: input, shape index: {}]
  %s3 = inlined_call_operand.hbm [shape: bf16[512,128], index: 3, kind: input, shape index: {}]
  %s4 = inlined_call_operand.hbm [shape: bf16[16,128], index: 4, kind: output, shape index: {}]
  %s5 = sld [smem:[#allocation0]]
  $region50: #{tpu_custom_call.1} parent=0
    _
  %s7 = ssub.s32 1, %s5
  %s8 = scalar_select 0, %s7, %s5
  $region1: #{tpu_custom_call.1} parent=0
    #allocation3 [shape = 'u8[4096]{0}', space=vmem, size = 0x1000, scoped, tag = 'input window, operand 0, single buffered']
    #allocation4 [shape = 's32[1]{0}', space=sflag, size = 0x4, scoped, tag = 'scoped memory for tpu_custom_call.1']
    #allocation5 [shape = 's32[1]{0}', space=sflag, size = 0x4, scoped, tag = 'scoped memory for tpu_custom_call.1']
    #allocation6 [shape = 'u8[131072]{0}', space=vmem, size = 0x20000, scoped, tag = 'input window, operand 1, single buffered']
    #allocation7 [shape = 's32[1]{0}', space=sflag, size = 0x4, scoped, tag = 'scoped memory for tpu_custom_call.1']
    #allocation8 [shape = 'u8[131072]{0}', space=vmem, size = 0x20000, scoped, tag = 'input window, operand 2, single buffered']
    #allocation9 [shape = 'u8[131072]{0}', space=vmem, size = 0x20000, scoped, tag = 'input window, operand 3, single buffered']
    #allocation10 [shape = 's32[1]{0}', space=sflag, size = 0x4, scoped, tag = 'scoped memory for tpu_custom_call.1']
    #allocation11 [shape = 'u8[4096]{0}', space=vmem, size = 0x1000, scoped, tag = 'output window, operand 0, single buffered']
    %9 = vsyncpa [#allocation4], 0
    %10 = vsyncpa [#allocation7], 0
    %11 = vsyncpa [#allocation10], 0
    %12 = vsyncpa [#allocation5], 0
    // Predicated region
    $region2: #{tpu_custom_call.1} parent=1 // pred_check
      _
    $region3: #{tpu_custom_call.1} parent=1 // pred_check_branch
      %14 = sbr.rel (0) target = $region5
    $region4: #{tpu_custom_call.1} parent=1 // pred_region
      %s16 = ssub.s32 128, 128
      %17 = vsyncadd [#allocation4], %s16
      %s18 = sshll.u32 [#allocation3], 4
      %s19 = int_to_ptr.vmem [resolvable:$true] %s18
      %24 = dma.hbm_to_vmem [thread:$0]  %s0, 128, %s19, [#allocation4], 64, 64, 4
    $region5: #{tpu_custom_call.1} parent=1 // pred_fallthru
      _
    // Predicated region
    $region6: #{tpu_custom_call.1} parent=1 // pred_check
      _
    $region7: #{tpu_custom_call.1} parent=1 // pred_check_branch
      %26 = sbr.rel (0) target = $region9
    $region8: #{tpu_custom_call.1} parent=1 // pred_region
      %s28 = ssub.s32 4096, 4096
      %29 = vsyncadd [#allocation7], %s28
      %s30 = sshll.u32 [#allocation6], 4
      %s31 = int_to_ptr.vmem [resolvable:$true] %s30
      %36 = dma.hbm_to_vmem [thread:$0]  %s1, 4096, %s31, [#allocation7], 256, 256, 16
    $region9: #{tpu_custom_call.1} parent=1 // pred_fallthru
      _
    // Predicated region
    $region10: #{tpu_custom_call.1} parent=1 // pred_check
      _
    $region11: #{tpu_custom_call.1} parent=1 // pred_check_branch
      %38 = sbr.rel (0) target = $region13
    $region12: #{tpu_custom_call.1} parent=1 // pred_region
      %s40 = ssub.s32 4096, 4096
      %41 = vsyncadd [#allocation7], %s40
      %s42 = sshll.u32 [#allocation8], 4
      %s43 = int_to_ptr.vmem [resolvable:$true] %s42
      %48 = dma.hbm_to_vmem [thread:$0]  %s2, 4096, %s43, [#allocation7], 256, 256, 16
    $region13: #{tpu_custom_call.1} parent=1 // pred_fallthru
      _
    // Predicated region
    $region14: #{tpu_custom_call.1} parent=1 // pred_check
      _
    $region15: #{tpu_custom_call.1} parent=1 // pred_check_branch
      %50 = sbr.rel (0) target = $region17
    $region16: #{tpu_custom_call.1} parent=1 // pred_region
      %s52 = ssub.s32 4096, 4096
      %53 = vsyncadd [#allocation10], %s52
      %s54 = sshll.u32 [#allocation9], 4
      %s55 = int_to_ptr.vmem [resolvable:$true] %s54
      %60 = dma.hbm_to_vmem [thread:$0]  %s3, 4096, %s55, [#allocation10], 64, 64, 4
    $region17: #{tpu_custom_call.1} parent=1 // pred_fallthru
      _
    // Predicated region
    $region18: #{tpu_custom_call.1} parent=1 // pred_check
      _
    $region19: #{tpu_custom_call.1} parent=1 // pred_check_branch
      %62 = sbr.rel (0) target = $region21
    $region20: #{tpu_custom_call.1} parent=1 // pred_region
      %63 = dma.done [#allocation4], 128
    $region21: #{tpu_custom_call.1} parent=1 // pred_fallthru
      _
    // Predicated region
    $region22: #{tpu_custom_call.1} parent=1 // pred_check
      _
    $region23: #{tpu_custom_call.1} parent=1 // pred_check_branch
      %65 = sbr.rel (0) target = $region25
    $region24: #{tpu_custom_call.1} parent=1 // pred_region
      %66 = dma.done [#allocation7], 4096
    $region25: #{tpu_custom_call.1} parent=1 // pred_fallthru
      _
    // Predicated region
    $region26: #{tpu_custom_call.1} parent=1 // pred_check
      _
    $region27: #{tpu_custom_call.1} parent=1 // pred_check_branch
      %68 = sbr.rel (0) target = $region29
    $region28: #{tpu_custom_call.1} parent=1 // pred_region
      %69 = dma.done [#allocation7], 4096
    $region29: #{tpu_custom_call.1} parent=1 // pred_fallthru
      _
    // Predicated region
    $region30: #{tpu_custom_call.1} parent=1 // pred_check
      _
    $region31: #{tpu_custom_call.1} parent=1 // pred_check_branch
      %71 = sbr.rel (0) target = $region33
    $region32: #{tpu_custom_call.1} parent=1 // pred_region
      %72 = dma.done [#allocation10], 4096
    $region33: #{tpu_custom_call.1} parent=1 // pred_fallthru
      _
    %p74 = scmp.eq.s32.totalorder 0, 0
    // Predicated region
    $region34: #{tpu_custom_call.1} parent=1 // pred_check
      %p75 = pneg %p74
    $region35: #{tpu_custom_call.1} parent=1 // pred_check_branch
      %77 = sbr.rel (%p75) target = $region37
    $region36: #{tpu_custom_call.1} parent=1 // pred_region
      %78 = vst [vmem:[#allocation2] sm:$0xff] 0.0
      %79 = vst [vmem:[#allocation2 + $0x8] sm:$0xff] 0.0
    $region37: #{tpu_custom_call.1} parent=1 // pred_fallthru
      _
    %v80 = vld [vmem:[#allocation3] sm:$0xf]
    %v81 = vld [vmem:[#allocation3 + $0x4] sm:$0xf]
    %v82 = vld [vmem:[#allocation6] sm:$0xff]
    %v83 = vld [vmem:[#allocation6 + $0x8] sm:$0xff]
    %v84 = vld [vmem:[#allocation6 + $0x10] sm:$0xff]
    %v85 = vld [vmem:[#allocation6 + $0x18] sm:$0xff]
    %v86 = vld [vmem:[#allocation6 + $0x20] sm:$0xff]
    %v87 = vld [vmem:[#allocation6 + $0x28] sm:$0xff]
    %v88 = vld [vmem:[#allocation6 + $0x30] sm:$0xff]
    %v89 = vld [vmem:[#allocation6 + $0x38] sm:$0xff]
    %v90 = vld [vmem:[#allocation6 + $0x40] sm:$0xff]
    %v91 = vld [vmem:[#allocation6 + $0x48] sm:$0xff]
    %v92 = vld [vmem:[#allocation6 + $0x50] sm:$0xff]
    %v93 = vld [vmem:[#allocation6 + $0x58] sm:$0xff]
    %v94 = vld [vmem:[#allocation6 + $0x60] sm:$0xff]
    %v95 = vld [vmem:[#allocation6 + $0x68] sm:$0xff]
    %v96 = vld [vmem:[#allocation6 + $0x70] sm:$0xff]
    %v97 = vld [vmem:[#allocation6 + $0x78] sm:$0xff]
    %v98 = vld [vmem:[#allocation6 + $0x80] sm:$0xff]
    %v99 = vld [vmem:[#allocation6 + $0x88] sm:$0xff]
    %v100 = vld [vmem:[#allocation6 + $0x90] sm:$0xff]
    %v101 = vld [vmem:[#allocation6 + $0x98] sm:$0xff]
    %v102 = vld [vmem:[#allocation6 + $0xa0] sm:$0xff]
    %v103 = vld [vmem:[#allocation6 + $0xa8] sm:$0xff]
    %v104 = vld [vmem:[#allocation6 + $0xb0] sm:$0xff]
    %v105 = vld [vmem:[#allocation6 + $0xb8] sm:$0xff]
    %v106 = vld [vmem:[#allocation6 + $0xc0] sm:$0xff]
    %v107 = vld [vmem:[#allocation6 + $0xc8] sm:$0xff]
    %v108 = vld [vmem:[#allocation6 + $0xd0] sm:$0xff]
    %v109 = vld [vmem:[#allocation6 + $0xd8] sm:$0xff]
    %v110 = vld [vmem:[#allocation6 + $0xe0] sm:$0xff]
    %v111 = vld [vmem:[#allocation6 + $0xe8] sm:$0xff]
    %v112 = vld [vmem:[#allocation6 + $0xf0] sm:$0xff]
    %v113 = vld [vmem:[#allocation6 + $0xf8] sm:$0xff]
    %v116 = vunpack.c.l.b16 %v80
    %v117 = vunpack.c.l.b16 %v81
    %v118 = vpack.c.b16 %v117, %v116
    %v152 = vunpack.c.l.b16 %v82
    %v153 = vunpack.c.h.b16 %v82
    %v154 = vunpack.c.l.b16 %v83
    %v155 = vunpack.c.h.b16 %v83
    %v156 = vunpack.c.l.b16 %v84
    %v157 = vunpack.c.h.b16 %v84
    %v158 = vunpack.c.l.b16 %v85
    %v159 = vunpack.c.h.b16 %v85
    %v160 = vunpack.c.l.b16 %v86
    %v161 = vunpack.c.h.b16 %v86
    %v162 = vunpack.c.l.b16 %v87
    %v163 = vunpack.c.h.b16 %v87
    %v164 = vunpack.c.l.b16 %v88
    %v165 = vunpack.c.h.b16 %v88
    %v166 = vunpack.c.l.b16 %v89
    %v167 = vunpack.c.h.b16 %v89
    %v168 = vunpack.c.l.b16 %v90
    %v169 = vunpack.c.h.b16 %v90
    %v170 = vunpack.c.l.b16 %v91
    %v171 = vunpack.c.h.b16 %v91
    %v172 = vunpack.c.l.b16 %v92
    %v173 = vunpack.c.h.b16 %v92
    %v174 = vunpack.c.l.b16 %v93
    %v175 = vunpack.c.h.b16 %v93
    %v176 = vunpack.c.l.b16 %v94
    %v177 = vunpack.c.h.b16 %v94
    %v178 = vunpack.c.l.b16 %v95
    %v179 = vunpack.c.h.b16 %v95
    %v180 = vunpack.c.l.b16 %v96
    %v181 = vunpack.c.h.b16 %v96
    %v182 = vunpack.c.l.b16 %v97
    %v183 = vunpack.c.h.b16 %v97
    %v184 = vunpack.c.l.b16 %v98
    %v185 = vunpack.c.h.b16 %v98
    %v186 = vunpack.c.l.b16 %v99
    %v187 = vunpack.c.h.b16 %v99
    %v188 = vunpack.c.l.b16 %v100
    %v189 = vunpack.c.h.b16 %v100
    %v190 = vunpack.c.l.b16 %v101
    %v191 = vunpack.c.h.b16 %v101
    %v192 = vunpack.c.l.b16 %v102
    %v193 = vunpack.c.h.b16 %v102
    %v194 = vunpack.c.l.b16 %v103
    %v195 = vunpack.c.h.b16 %v103
    %v196 = vunpack.c.l.b16 %v104
    %v197 = vunpack.c.h.b16 %v104
    %v198 = vunpack.c.l.b16 %v105
    %v199 = vunpack.c.h.b16 %v105
    %v200 = vunpack.c.l.b16 %v106
    %v201 = vunpack.c.h.b16 %v106
    %v202 = vunpack.c.l.b16 %v107
    %v203 = vunpack.c.h.b16 %v107
    %v204 = vunpack.c.l.b16 %v108
    %v205 = vunpack.c.h.b16 %v108
    %v206 = vunpack.c.l.b16 %v109
    %v207 = vunpack.c.h.b16 %v109
    %v208 = vunpack.c.l.b16 %v110
    %v209 = vunpack.c.h.b16 %v110
    %v210 = vunpack.c.l.b16 %v111
    %v211 = vunpack.c.h.b16 %v111
    %v212 = vunpack.c.l.b16 %v112
    %v213 = vunpack.c.h.b16 %v112
    %v214 = vunpack.c.l.b16 %v113
    %v215 = vunpack.c.h.b16 %v113
    %v216 = vpack.c.b16 %v156, %v152
    %v217 = vpack.c.b16 %v157, %v153
    %v218 = vpack.c.b16 %v158, %v154
    %v219 = vpack.c.b16 %v159, %v155
    %v220 = vpack.c.b16 %v164, %v160
    %v221 = vpack.c.b16 %v165, %v161
    %v222 = vpack.c.b16 %v166, %v162
    %v223 = vpack.c.b16 %v167, %v163
    %v224 = vpack.c.b16 %v172, %v168
    %v225 = vpack.c.b16 %v173, %v169
    %v226 = vpack.c.b16 %v174, %v170
    %v227 = vpack.c.b16 %v175, %v171
    %v228 = vpack.c.b16 %v180, %v176
    %v229 = vpack.c.b16 %v181, %v177
    %v230 = vpack.c.b16 %v182, %v178
    %v231 = vpack.c.b16 %v183, %v179
    %v232 = vpack.c.b16 %v188, %v184
    %v233 = vpack.c.b16 %v189, %v185
    %v234 = vpack.c.b16 %v190, %v186
    %v235 = vpack.c.b16 %v191, %v187
    %v236 = vpack.c.b16 %v196, %v192
    %v237 = vpack.c.b16 %v197, %v193
    %v238 = vpack.c.b16 %v198, %v194
    %v239 = vpack.c.b16 %v199, %v195
    %v240 = vpack.c.b16 %v204, %v200
    %v241 = vpack.c.b16 %v205, %v201
    %v242 = vpack.c.b16 %v206, %v202
    %v243 = vpack.c.b16 %v207, %v203
    %v244 = vpack.c.b16 %v212, %v208
    %v245 = vpack.c.b16 %v213, %v209
    %v246 = vpack.c.b16 %v214, %v210
    %v247 = vpack.c.b16 %v215, %v211
    %280 = vmatprep.subr.bf16.mxu0 %v217
    %281 = vmatpush1.bf16.msra.mxu0 %v216
    %282 = vmatprep.subr.bf16.mxu0 %v221
    %283 = vmatpush1.bf16.msra.mxu0 %v220
    %284 = vmatprep.subr.bf16.mxu0 %v225
    %285 = vmatpush1.bf16.msra.mxu0 %v224
    %286 = vmatprep.subr.bf16.mxu0 %v229
    %287 = vmatpush1.bf16.msra.mxu0 %v228
    %288 = vmatprep.subr.bf16.mxu0 %v233
    %289 = vmatpush1.bf16.msra.mxu0 %v232
    %290 = vmatprep.subr.bf16.mxu0 %v237
    %291 = vmatpush1.bf16.msra.mxu0 %v236
    %292 = vmatprep.subr.bf16.mxu0 %v241
    %293 = vmatpush1.bf16.msra.mxu0 %v240
    %294 = vmatprep.subr.bf16.mxu0 %v245
    %295 = vmatpush1.bf16.msra.mxu0 %v244
    %296 = vmatprep.subr.bf16.mxu0 0
    %297 = vmatpush1.bf16.msra.mxu0 0
    %298 = vmatprep.subr.bf16.mxu0 0
    %299 = vmatpush1.bf16.msra.mxu0 0
    %300 = vmatprep.subr.bf16.mxu0 0
    %301 = vmatpush1.bf16.msra.mxu0 0
    %302 = vmatprep.subr.bf16.mxu0 0
    %303 = vmatpush1.bf16.msra.mxu0 0
    %304 = vmatprep.subr.bf16.mxu0 0
    %305 = vmatpush1.bf16.msra.mxu0 0
    %306 = vmatprep.subr.bf16.mxu0 0
    %307 = vmatpush1.bf16.msra.mxu0 0
    %308 = vmatprep.subr.bf16.mxu0 0
    %309 = vmatpush1.bf16.msra.mxu0 0
    %310 = vmatprep.subr.bf16.mxu0 0
    %311 = vmatpush1.bf16.msra.mxu0 0
    %312 = vmatprep.mubr.bf16.mxu0 0
    %313 = vmatmul.mubr.bf16.gmra.mrb[0].mxu0 %v118
    %v314 = vpop.f32.mrb[0].mxu0
    %v315 = vadd.f32 0.0, %v314
    %v316 = vpop.f32.mrb[0].mxu0
    %v317 = vadd.f32 0.0, %v316
    %v318 = vpop.f32.mrb[0].mxu0
    %v319 = vadd.f32 0.0, %v318
    %v320 = vpop.f32.mrb[0].mxu0
    %v321 = vadd.f32 0.0, %v320
    %322 = vdwg.mxu0
    %323 = vmatprep.subr.bf16.mxu0 %v219
    %324 = vmatpush1.bf16.msra.mxu0 %v218
    %325 = vmatprep.subr.bf16.mxu0 %v223
    %326 = vmatpush1.bf16.msra.mxu0 %v222
    %327 = vmatprep.subr.bf16.mxu0 %v227
    %328 = vmatpush1.bf16.msra.mxu0 %v226
    %329 = vmatprep.subr.bf16.mxu0 %v231
    %330 = vmatpush1.bf16.msra.mxu0 %v230
    %331 = vmatprep.subr.bf16.mxu0 %v235
    %332 = vmatpush1.bf16.msra.mxu0 %v234
    %333 = vmatprep.subr.bf16.mxu0 %v239
    %334 = vmatpush1.bf16.msra.mxu0 %v238
    %335 = vmatprep.subr.bf16.mxu0 %v243
    %336 = vmatpush1.bf16.msra.mxu0 %v242
    %337 = vmatprep.subr.bf16.mxu0 %v247
    %338 = vmatpush1.bf16.msra.mxu0 %v246
    %339 = vmatprep.subr.bf16.mxu0 0
    %340 = vmatpush1.bf16.msra.mxu0 0
    %341 = vmatprep.subr.bf16.mxu0 0
    %342 = vmatpush1.bf16.msra.mxu0 0
    %343 = vmatprep.subr.bf16.mxu0 0
    %344 = vmatpush1.bf16.msra.mxu0 0
    %345 = vmatprep.subr.bf16.mxu0 0
    %346 = vmatpush1.bf16.msra.mxu0 0
    %347 = vmatprep.subr.bf16.mxu0 0
    %348 = vmatpush1.bf16.msra.mxu0 0
    %349 = vmatprep.subr.bf16.mxu0 0
    %350 = vmatpush1.bf16.msra.mxu0 0
    %351 = vmatprep.subr.bf16.mxu0 0
    %352 = vmatpush1.bf16.msra.mxu0 0
    %353 = vmatprep.subr.bf16.mxu0 0
    %354 = vmatpush1.bf16.msra.mxu0 0
    %355 = vmatprep.mubr.bf16.mxu0 0
    %356 = vmatmul.mubr.bf16.gmra.mrb[0].mxu0 %v118
    %v357 = vpop.f32.mrb[0].mxu0
    %v358 = vadd.f32 0.0, %v357
    %v359 = vpop.f32.mrb[0].mxu0
    %v360 = vadd.f32 0.0, %v359
    %v361 = vpop.f32.mrb[0].mxu0
    %v362 = vadd.f32 0.0, %v361
    %v363 = vpop.f32.mrb[0].mxu0
    %v364 = vadd.f32 0.0, %v363
    %365 = vdwg.mxu0
    %v366 = vld [vmem:[#allocation8] sm:$0xff]
    %v367 = vld [vmem:[#allocation8 + $0x8] sm:$0xff]
    %v368 = vld [vmem:[#allocation8 + $0x10] sm:$0xff]
    %v369 = vld [vmem:[#allocation8 + $0x18] sm:$0xff]
    %v370 = vld [vmem:[#allocation8 + $0x20] sm:$0xff]
    %v371 = vld [vmem:[#allocation8 + $0x28] sm:$0xff]
    %v372 = vld [vmem:[#allocation8 + $0x30] sm:$0xff]
    %v373 = vld [vmem:[#allocation8 + $0x38] sm:$0xff]
    %v374 = vld [vmem:[#allocation8 + $0x40] sm:$0xff]
    %v375 = vld [vmem:[#allocation8 + $0x48] sm:$0xff]
    %v376 = vld [vmem:[#allocation8 + $0x50] sm:$0xff]
    %v377 = vld [vmem:[#allocation8 + $0x58] sm:$0xff]
    %v378 = vld [vmem:[#allocation8 + $0x60] sm:$0xff]
    %v379 = vld [vmem:[#allocation8 + $0x68] sm:$0xff]
    %v380 = vld [vmem:[#allocation8 + $0x70] sm:$0xff]
    %v381 = vld [vmem:[#allocation8 + $0x78] sm:$0xff]
    %v382 = vld [vmem:[#allocation8 + $0x80] sm:$0xff]
    %v383 = vld [vmem:[#allocation8 + $0x88] sm:$0xff]
    %v384 = vld [vmem:[#allocation8 + $0x90] sm:$0xff]
    %v385 = vld [vmem:[#allocation8 + $0x98] sm:$0xff]
    %v386 = vld [vmem:[#allocation8 + $0xa0] sm:$0xff]
    %v387 = vld [vmem:[#allocation8 + $0xa8] sm:$0xff]
    %v388 = vld [vmem:[#allocation8 + $0xb0] sm:$0xff]
    %v389 = vld [vmem:[#allocation8 + $0xb8] sm:$0xff]
    %v390 = vld [vmem:[#allocation8 + $0xc0] sm:$0xff]
    %v391 = vld [vmem:[#allocation8 + $0xc8] sm:$0xff]
    %v392 = vld [vmem:[#allocation8 + $0xd0] sm:$0xff]
    %v393 = vld [vmem:[#allocation8 + $0xd8] sm:$0xff]
    %v394 = vld [vmem:[#allocation8 + $0xe0] sm:$0xff]
    %v395 = vld [vmem:[#allocation8 + $0xe8] sm:$0xff]
    %v396 = vld [vmem:[#allocation8 + $0xf0] sm:$0xff]
    %v397 = vld [vmem:[#allocation8 + $0xf8] sm:$0xff]
    %v430 = vunpack.c.l.b16 %v366
    %v431 = vunpack.c.h.b16 %v366
    %v432 = vunpack.c.l.b16 %v367
    %v433 = vunpack.c.h.b16 %v367
    %v434 = vunpack.c.l.b16 %v368
    %v435 = vunpack.c.h.b16 %v368
    %v436 = vunpack.c.l.b16 %v369
    %v437 = vunpack.c.h.b16 %v369
    %v438 = vunpack.c.l.b16 %v370
    %v439 = vunpack.c.h.b16 %v370
    %v440 = vunpack.c.l.b16 %v371
    %v441 = vunpack.c.h.b16 %v371
    %v442 = vunpack.c.l.b16 %v372
    %v443 = vunpack.c.h.b16 %v372
    %v444 = vunpack.c.l.b16 %v373
    %v445 = vunpack.c.h.b16 %v373
    %v446 = vunpack.c.l.b16 %v374
    %v447 = vunpack.c.h.b16 %v374
    %v448 = vunpack.c.l.b16 %v375
    %v449 = vunpack.c.h.b16 %v375
    %v450 = vunpack.c.l.b16 %v376
    %v451 = vunpack.c.h.b16 %v376
    %v452 = vunpack.c.l.b16 %v377
    %v453 = vunpack.c.h.b16 %v377
    %v454 = vunpack.c.l.b16 %v378
    %v455 = vunpack.c.h.b16 %v378
    %v456 = vunpack.c.l.b16 %v379
    %v457 = vunpack.c.h.b16 %v379
    %v458 = vunpack.c.l.b16 %v380
    %v459 = vunpack.c.h.b16 %v380
    %v460 = vunpack.c.l.b16 %v381
    %v461 = vunpack.c.h.b16 %v381
    %v462 = vunpack.c.l.b16 %v382
    %v463 = vunpack.c.h.b16 %v382
    %v464 = vunpack.c.l.b16 %v383
    %v465 = vunpack.c.h.b16 %v383
    %v466 = vunpack.c.l.b16 %v384
    %v467 = vunpack.c.h.b16 %v384
    %v468 = vunpack.c.l.b16 %v385
    %v469 = vunpack.c.h.b16 %v385
    %v470 = vunpack.c.l.b16 %v386
    %v471 = vunpack.c.h.b16 %v386
    %v472 = vunpack.c.l.b16 %v387
    %v473 = vunpack.c.h.b16 %v387
    %v474 = vunpack.c.l.b16 %v388
    %v475 = vunpack.c.h.b16 %v388
    %v476 = vunpack.c.l.b16 %v389
    %v477 = vunpack.c.h.b16 %v389
    %v478 = vunpack.c.l.b16 %v390
    %v479 = vunpack.c.h.b16 %v390
    %v480 = vunpack.c.l.b16 %v391
    %v481 = vunpack.c.h.b16 %v391
    %v482 = vunpack.c.l.b16 %v392
    %v483 = vunpack.c.h.b16 %v392
    %v484 = vunpack.c.l.b16 %v393
    %v485 = vunpack.c.h.b16 %v393
    %v486 = vunpack.c.l.b16 %v394
    %v487 = vunpack.c.h.b16 %v394
    %v488 = vunpack.c.l.b16 %v395
    %v489 = vunpack.c.h.b16 %v395
    %v490 = vunpack.c.l.b16 %v396
    %v491 = vunpack.c.h.b16 %v396
    %v492 = vunpack.c.l.b16 %v397
    %v493 = vunpack.c.h.b16 %v397
    %v494 = vpack.c.b16 %v434, %v430
    %v495 = vpack.c.b16 %v435, %v431
    %v496 = vpack.c.b16 %v436, %v432
    %v497 = vpack.c.b16 %v437, %v433
    %v498 = vpack.c.b16 %v442, %v438
    %v499 = vpack.c.b16 %v443, %v439
    %v500 = vpack.c.b16 %v444, %v440
    %v501 = vpack.c.b16 %v445, %v441
    %v502 = vpack.c.b16 %v450, %v446
    %v503 = vpack.c.b16 %v451, %v447
    %v504 = vpack.c.b16 %v452, %v448
    %v505 = vpack.c.b16 %v453, %v449
    %v506 = vpack.c.b16 %v458, %v454
    %v507 = vpack.c.b16 %v459, %v455
    %v508 = vpack.c.b16 %v460, %v456
    %v509 = vpack.c.b16 %v461, %v457
    %v510 = vpack.c.b16 %v466, %v462
    %v511 = vpack.c.b16 %v467, %v463
    %v512 = vpack.c.b16 %v468, %v464
    %v513 = vpack.c.b16 %v469, %v465
    %v514 = vpack.c.b16 %v474, %v470
    %v515 = vpack.c.b16 %v475, %v471
    %v516 = vpack.c.b16 %v476, %v472
    %v517 = vpack.c.b16 %v477, %v473
    %v518 = vpack.c.b16 %v482, %v478
    %v519 = vpack.c.b16 %v483, %v479
    %v520 = vpack.c.b16 %v484, %v480
    %v521 = vpack.c.b16 %v485, %v481
    %v522 = vpack.c.b16 %v490, %v486
    %v523 = vpack.c.b16 %v491, %v487
    %v524 = vpack.c.b16 %v492, %v488
    %v525 = vpack.c.b16 %v493, %v489
    %558 = vmatprep.subr.bf16.mxu0 %v495
    %559 = vmatpush1.bf16.msra.mxu0 %v494
    %560 = vmatprep.subr.bf16.mxu0 %v499
    %561 = vmatpush1.bf16.msra.mxu0 %v498
    %562 = vmatprep.subr.bf16.mxu0 %v503
    %563 = vmatpush1.bf16.msra.mxu0 %v502
    %564 = vmatprep.subr.bf16.mxu0 %v507
    %565 = vmatpush1.bf16.msra.mxu0 %v506
    %566 = vmatprep.subr.bf16.mxu0 %v511
    %567 = vmatpush1.bf16.msra.mxu0 %v510
    %568 = vmatprep.subr.bf16.mxu0 %v515
    %569 = vmatpush1.bf16.msra.mxu0 %v514
    %570 = vmatprep.subr.bf16.mxu0 %v519
    %571 = vmatpush1.bf16.msra.mxu0 %v518
    %572 = vmatprep.subr.bf16.mxu0 %v523
    %573 = vmatpush1.bf16.msra.mxu0 %v522
    %574 = vmatprep.subr.bf16.mxu0 0
    %575 = vmatpush1.bf16.msra.mxu0 0
    %576 = vmatprep.subr.bf16.mxu0 0
    %577 = vmatpush1.bf16.msra.mxu0 0
    %578 = vmatprep.subr.bf16.mxu0 0
    %579 = vmatpush1.bf16.msra.mxu0 0
    %580 = vmatprep.subr.bf16.mxu0 0
    %581 = vmatpush1.bf16.msra.mxu0 0
    %582 = vmatprep.subr.bf16.mxu0 0
    %583 = vmatpush1.bf16.msra.mxu0 0
    %584 = vmatprep.subr.bf16.mxu0 0
    %585 = vmatpush1.bf16.msra.mxu0 0
    %586 = vmatprep.subr.bf16.mxu0 0
    %587 = vmatpush1.bf16.msra.mxu0 0
    %588 = vmatprep.subr.bf16.mxu0 0
    %589 = vmatpush1.bf16.msra.mxu0 0
    %590 = vmatprep.mubr.bf16.mxu0 0
    %591 = vmatmul.mubr.bf16.gmra.mrb[0].mxu0 %v118
    %v592 = vpop.f32.mrb[0].mxu0
    %v593 = vadd.f32 0.0, %v592
    %v594 = vpop.f32.mrb[0].mxu0
    %v595 = vadd.f32 0.0, %v594
    %v596 = vpop.f32.mrb[0].mxu0
    %v597 = vadd.f32 0.0, %v596
    %v598 = vpop.f32.mrb[0].mxu0
    %v599 = vadd.f32 0.0, %v598
    %600 = vdwg.mxu0
    %601 = vmatprep.subr.bf16.mxu0 %v497
    %602 = vmatpush1.bf16.msra.mxu0 %v496
    %603 = vmatprep.subr.bf16.mxu0 %v501
    %604 = vmatpush1.bf16.msra.mxu0 %v500
    %605 = vmatprep.subr.bf16.mxu0 %v505
    %606 = vmatpush1.bf16.msra.mxu0 %v504
    %607 = vmatprep.subr.bf16.mxu0 %v509
    %608 = vmatpush1.bf16.msra.mxu0 %v508
    %609 = vmatprep.subr.bf16.mxu0 %v513
    %610 = vmatpush1.bf16.msra.mxu0 %v512
    %611 = vmatprep.subr.bf16.mxu0 %v517
    %612 = vmatpush1.bf16.msra.mxu0 %v516
    %613 = vmatprep.subr.bf16.mxu0 %v521
    %614 = vmatpush1.bf16.msra.mxu0 %v520
    %615 = vmatprep.subr.bf16.mxu0 %v525
    %616 = vmatpush1.bf16.msra.mxu0 %v524
    %617 = vmatprep.subr.bf16.mxu0 0
    %618 = vmatpush1.bf16.msra.mxu0 0
    %619 = vmatprep.subr.bf16.mxu0 0
    %620 = vmatpush1.bf16.msra.mxu0 0
    %621 = vmatprep.subr.bf16.mxu0 0
    %622 = vmatpush1.bf16.msra.mxu0 0
    %623 = vmatprep.subr.bf16.mxu0 0
    %624 = vmatpush1.bf16.msra.mxu0 0
    %625 = vmatprep.subr.bf16.mxu0 0
    %626 = vmatpush1.bf16.msra.mxu0 0
    %627 = vmatprep.subr.bf16.mxu0 0
    %628 = vmatpush1.bf16.msra.mxu0 0
    %629 = vmatprep.subr.bf16.mxu0 0
    %630 = vmatpush1.bf16.msra.mxu0 0
    %631 = vmatprep.subr.bf16.mxu0 0
    %632 = vmatpush1.bf16.msra.mxu0 0
    %633 = vmatprep.mubr.bf16.mxu0 0
    %634 = vmatmul.mubr.bf16.gmra.mrb[0].mxu0 %v118
    %v635 = vpop.f32.mrb[0].mxu0
    %v636 = vadd.f32 0.0, %v635
    %v637 = vpop.f32.mrb[0].mxu0
    %v638 = vadd.f32 0.0, %v637
    %v639 = vpop.f32.mrb[0].mxu0
    %v640 = vadd.f32 0.0, %v639
    %v641 = vpop.f32.mrb[0].mxu0
    %v642 = vadd.f32 0.0, %v641
    %643 = vdwg.mxu0
    %v644 = vxor.u32 %v315, 2147483648
    %v645 = vxor.u32 %v317, 2147483648
    %v646 = vxor.u32 %v358, 2147483648
    %v647 = vxor.u32 %v360, 2147483648
    %v648 = vxor.u32 %v319, 2147483648
    %v649 = vxor.u32 %v321, 2147483648
    %v650 = vxor.u32 %v362, 2147483648
    %v651 = vxor.u32 %v364, 2147483648
    %v652 = vmul.f32 %v644, 1.442695
    %v653 = vpow.pop %v652
    %v654 = vmul.f32 %v645, 1.442695
    %v655 = vpow.pop %v654
    %v656 = vmul.f32 %v646, 1.442695
    %v657 = vpow.pop %v656
    %v658 = vmul.f32 %v647, 1.442695
    %v659 = vpow.pop %v658
    %v660 = vmul.f32 %v648, 1.442695
    %v661 = vpow.pop %v660
    %v662 = vmul.f32 %v649, 1.442695
    %v663 = vpow.pop %v662
    %v664 = vmul.f32 %v650, 1.442695
    %v665 = vpow.pop %v664
    %v666 = vmul.f32 %v651, 1.442695
    %v667 = vpow.pop %v666
    %v668 = vadd.f32 %v653, 1.0
    %v669 = vadd.f32 %v655, 1.0
    %v670 = vadd.f32 %v657, 1.0
    %v671 = vadd.f32 %v659, 1.0
    %v672 = vadd.f32 %v661, 1.0
    %v673 = vadd.f32 %v663, 1.0
    %v674 = vadd.f32 %v665, 1.0
    %v675 = vadd.f32 %v667, 1.0
    %v676 = vrcp.pop %v668
    %v677 = vmul.f32 1.0, %v676
    %v678 = vrcp.pop %v669
    %v679 = vmul.f32 1.0, %v678
    %v680 = vrcp.pop %v670
    %v681 = vmul.f32 1.0, %v680
    %v682 = vrcp.pop %v671
    %v683 = vmul.f32 1.0, %v682
    %v684 = vrcp.pop %v672
    %v685 = vmul.f32 1.0, %v684
    %v686 = vrcp.pop %v673
    %v687 = vmul.f32 1.0, %v686
    %v688 = vrcp.pop %v674
    %v689 = vmul.f32 1.0, %v688
    %v690 = vrcp.pop %v675
    %v691 = vmul.f32 1.0, %v690
    %v692 = vmul.f32 %v315, %v677
    %v693 = vmul.f32 %v317, %v679
    %v694 = vmul.f32 %v358, %v681
    %v695 = vmul.f32 %v360, %v683
    %v696 = vmul.f32 %v319, %v685
    %v697 = vmul.f32 %v321, %v687
    %v698 = vmul.f32 %v362, %v689
    %v699 = vmul.f32 %v364, %v691
    %v700 = vmul.f32 %v692, %v593
    %v701 = vmul.f32 %v693, %v595
    %v702 = vmul.f32 %v694, %v636
    %v703 = vmul.f32 %v695, %v638
    %v704 = vmul.f32 %v696, %v597
    %v705 = vmul.f32 %v697, %v599
    %v706 = vmul.f32 %v698, %v640
    %v707 = vmul.f32 %v699, %v642
    %v708 = vld [vmem:[#allocation2] sm:$0xff]
    %v709 = vld [vmem:[#allocation2 + $0x8] sm:$0xff]
    %v710 = vpack.c.bf16 %v704, %v700
    %v711 = vpack.c.bf16 %v705, %v701
    %v712 = vpack.c.bf16 %v706, %v702
    %v713 = vpack.c.bf16 %v707, %v703
    %v714 = vld [vmem:[#allocation9] sm:$0xf]
    %v715 = vld [vmem:[#allocation9 + $0x4] sm:$0xf]
    %v716 = vld [vmem:[#allocation9 + $0x8] sm:$0xf]
    %v717 = vld [vmem:[#allocation9 + $0xc] sm:$0xf]
    %v718 = vld [vmem:[#allocation9 + $0x10] sm:$0xf]
    %v719 = vld [vmem:[#allocation9 + $0x14] sm:$0xf]
    %v720 = vld [vmem:[#allocation9 + $0x18] sm:$0xf]
    %v721 = vld [vmem:[#allocation9 + $0x1c] sm:$0xf]
    %v722 = vld [vmem:[#allocation9 + $0x20] sm:$0xf]
    %v723 = vld [vmem:[#allocation9 + $0x24] sm:$0xf]
    %v724 = vld [vmem:[#allocation9 + $0x28] sm:$0xf]
    %v725 = vld [vmem:[#allocation9 + $0x2c] sm:$0xf]
    %v726 = vld [vmem:[#allocation9 + $0x30] sm:$0xf]
    %v727 = vld [vmem:[#allocation9 + $0x34] sm:$0xf]
    %v728 = vld [vmem:[#allocation9 + $0x38] sm:$0xf]
    %v729 = vld [vmem:[#allocation9 + $0x3c] sm:$0xf]
    %v730 = vld [vmem:[#allocation9 + $0x40] sm:$0xf]
    %v731 = vld [vmem:[#allocation9 + $0x44] sm:$0xf]
    %v732 = vld [vmem:[#allocation9 + $0x48] sm:$0xf]
    %v733 = vld [vmem:[#allocation9 + $0x4c] sm:$0xf]
    %v734 = vld [vmem:[#allocation9 + $0x50] sm:$0xf]
    %v735 = vld [vmem:[#allocation9 + $0x54] sm:$0xf]
    %v736 = vld [vmem:[#allocation9 + $0x58] sm:$0xf]
    %v737 = vld [vmem:[#allocation9 + $0x5c] sm:$0xf]
    %v738 = vld [vmem:[#allocation9 + $0x60] sm:$0xf]
    %v739 = vld [vmem:[#allocation9 + $0x64] sm:$0xf]
    %v740 = vld [vmem:[#allocation9 + $0x68] sm:$0xf]
    %v741 = vld [vmem:[#allocation9 + $0x6c] sm:$0xf]
    %v742 = vld [vmem:[#allocation9 + $0x70] sm:$0xf]
    %v743 = vld [vmem:[#allocation9 + $0x74] sm:$0xf]
    %v744 = vld [vmem:[#allocation9 + $0x78] sm:$0xf]
    %v745 = vld [vmem:[#allocation9 + $0x7c] sm:$0xf]
    %v746 = vld [vmem:[#allocation9 + $0x80] sm:$0xf]
    %v747 = vld [vmem:[#allocation9 + $0x84] sm:$0xf]
    %v748 = vld [vmem:[#allocation9 + $0x88] sm:$0xf]
    %v749 = vld [vmem:[#allocation9 + $0x8c] sm:$0xf]
    %v750 = vld [vmem:[#allocation9 + $0x90] sm:$0xf]
    %v751 = vld [vmem:[#allocation9 + $0x94] sm:$0xf]
    %v752 = vld [vmem:[#allocation9 + $0x98] sm:$0xf]
    %v753 = vld [vmem:[#allocation9 + $0x9c] sm:$0xf]
    %v754 = vld [vmem:[#allocation9 + $0xa0] sm:$0xf]
    %v755 = vld [vmem:[#allocation9 + $0xa4] sm:$0xf]
    %v756 = vld [vmem:[#allocation9 + $0xa8] sm:$0xf]
    %v757 = vld [vmem:[#allocation9 + $0xac] sm:$0xf]
    %v758 = vld [vmem:[#allocation9 + $0xb0] sm:$0xf]
    %v759 = vld [vmem:[#allocation9 + $0xb4] sm:$0xf]
    %v760 = vld [vmem:[#allocation9 + $0xb8] sm:$0xf]
    %v761 = vld [vmem:[#allocation9 + $0xbc] sm:$0xf]
    %v762 = vld [vmem:[#allocation9 + $0xc0] sm:$0xf]
    %v763 = vld [vmem:[#allocation9 + $0xc4] sm:$0xf]
    %v764 = vld [vmem:[#allocation9 + $0xc8] sm:$0xf]
    %v765 = vld [vmem:[#allocation9 + $0xcc] sm:$0xf]
    %v766 = vld [vmem:[#allocation9 + $0xd0] sm:$0xf]
    %v767 = vld [vmem:[#allocation9 + $0xd4] sm:$0xf]
    %v768 = vld [vmem:[#allocation9 + $0xd8] sm:$0xf]
    %v769 = vld [vmem:[#allocation9 + $0xdc] sm:$0xf]
    %v770 = vld [vmem:[#allocation9 + $0xe0] sm:$0xf]
    %v771 = vld [vmem:[#allocation9 + $0xe4] sm:$0xf]
    %v772 = vld [vmem:[#allocation9 + $0xe8] sm:$0xf]
    %v773 = vld [vmem:[#allocation9 + $0xec] sm:$0xf]
    %v774 = vld [vmem:[#allocation9 + $0xf0] sm:$0xf]
    %v775 = vld [vmem:[#allocation9 + $0xf4] sm:$0xf]
    %v776 = vld [vmem:[#allocation9 + $0xf8] sm:$0xf]
    %v777 = vld [vmem:[#allocation9 + $0xfc] sm:$0xf]
    %v842 = vunpack.c.l.b16 %v714
    %v843 = vunpack.c.l.b16 %v715
    %v844 = vunpack.c.l.b16 %v716
    %v845 = vunpack.c.l.b16 %v717
    %v846 = vunpack.c.l.b16 %v718
    %v847 = vunpack.c.l.b16 %v719
    %v848 = vunpack.c.l.b16 %v720
    %v849 = vunpack.c.l.b16 %v721
    %v850 = vunpack.c.l.b16 %v722
    %v851 = vunpack.c.l.b16 %v723
    %v852 = vunpack.c.l.b16 %v724
    %v853 = vunpack.c.l.b16 %v725
    %v854 = vunpack.c.l.b16 %v726
    %v855 = vunpack.c.l.b16 %v727
    %v856 = vunpack.c.l.b16 %v728
    %v857 = vunpack.c.l.b16 %v729
    %v858 = vunpack.c.l.b16 %v730
    %v859 = vunpack.c.l.b16 %v731
    %v860 = vunpack.c.l.b16 %v732
    %v861 = vunpack.c.l.b16 %v733
    %v862 = vunpack.c.l.b16 %v734
    %v863 = vunpack.c.l.b16 %v735
    %v864 = vunpack.c.l.b16 %v736
    %v865 = vunpack.c.l.b16 %v737
    %v866 = vunpack.c.l.b16 %v738
    %v867 = vunpack.c.l.b16 %v739
    %v868 = vunpack.c.l.b16 %v740
    %v869 = vunpack.c.l.b16 %v741
    %v870 = vunpack.c.l.b16 %v742
    %v871 = vunpack.c.l.b16 %v743
    %v872 = vunpack.c.l.b16 %v744
    %v873 = vunpack.c.l.b16 %v745
    %v874 = vunpack.c.l.b16 %v746
    %v875 = vunpack.c.l.b16 %v747
    %v876 = vunpack.c.l.b16 %v748
    %v877 = vunpack.c.l.b16 %v749
    %v878 = vunpack.c.l.b16 %v750
    %v879 = vunpack.c.l.b16 %v751
    %v880 = vunpack.c.l.b16 %v752
    %v881 = vunpack.c.l.b16 %v753
    %v882 = vunpack.c.l.b16 %v754
    %v883 = vunpack.c.l.b16 %v755
    %v884 = vunpack.c.l.b16 %v756
    %v885 = vunpack.c.l.b16 %v757
    %v886 = vunpack.c.l.b16 %v758
    %v887 = vunpack.c.l.b16 %v759
    %v888 = vunpack.c.l.b16 %v760
    %v889 = vunpack.c.l.b16 %v761
    %v890 = vunpack.c.l.b16 %v762
    %v891 = vunpack.c.l.b16 %v763
    %v892 = vunpack.c.l.b16 %v764
    %v893 = vunpack.c.l.b16 %v765
    %v894 = vunpack.c.l.b16 %v766
    %v895 = vunpack.c.l.b16 %v767
    %v896 = vunpack.c.l.b16 %v768
    %v897 = vunpack.c.l.b16 %v769
    %v898 = vunpack.c.l.b16 %v770
    %v899 = vunpack.c.l.b16 %v771
    %v900 = vunpack.c.l.b16 %v772
    %v901 = vunpack.c.l.b16 %v773
    %v902 = vunpack.c.l.b16 %v774
    %v903 = vunpack.c.l.b16 %v775
    %v904 = vunpack.c.l.b16 %v776
    %v905 = vunpack.c.l.b16 %v777
    %v906 = vpack.c.b16 %v843, %v842
    %v907 = vpack.c.b16 %v845, %v844
    %v908 = vpack.c.b16 %v847, %v846
    %v909 = vpack.c.b16 %v849, %v848
    %v910 = vpack.c.b16 %v851, %v850
    %v911 = vpack.c.b16 %v853, %v852
    %v912 = vpack.c.b16 %v855, %v854
    %v913 = vpack.c.b16 %v857, %v856
    %v914 = vpack.c.b16 %v859, %v858
    %v915 = vpack.c.b16 %v861, %v860
    %v916 = vpack.c.b16 %v863, %v862
    %v917 = vpack.c.b16 %v865, %v864
    %v918 = vpack.c.b16 %v867, %v866
    %v919 = vpack.c.b16 %v869, %v868
    %v920 = vpack.c.b16 %v871, %v870
    %v921 = vpack.c.b16 %v873, %v872
    %v922 = vpack.c.b16 %v875, %v874
    %v923 = vpack.c.b16 %v877, %v876
    %v924 = vpack.c.b16 %v879, %v878
    %v925 = vpack.c.b16 %v881, %v880
    %v926 = vpack.c.b16 %v883, %v882
    %v927 = vpack.c.b16 %v885, %v884
    %v928 = vpack.c.b16 %v887, %v886
    %v929 = vpack.c.b16 %v889, %v888
    %v930 = vpack.c.b16 %v891, %v890
    %v931 = vpack.c.b16 %v893, %v892
    %v932 = vpack.c.b16 %v895, %v894
    %v933 = vpack.c.b16 %v897, %v896
    %v934 = vpack.c.b16 %v899, %v898
    %v935 = vpack.c.b16 %v901, %v900
    %v936 = vpack.c.b16 %v903, %v902
    %v937 = vpack.c.b16 %v905, %v904
    %970 = vmatprep.subr.bf16.mxu0 0
    %971 = vmatpush1.bf16.msra.mxu0 %v906
    %972 = vmatprep.subr.bf16.mxu0 0
    %973 = vmatpush1.bf16.msra.mxu0 %v907
    %974 = vmatprep.subr.bf16.mxu0 0
    %975 = vmatpush1.bf16.msra.mxu0 %v908
    %976 = vmatprep.subr.bf16.mxu0 0
    %977 = vmatpush1.bf16.msra.mxu0 %v909
    %978 = vmatprep.subr.bf16.mxu0 0
    %979 = vmatpush1.bf16.msra.mxu0 %v910
    %980 = vmatprep.subr.bf16.mxu0 0
    %981 = vmatpush1.bf16.msra.mxu0 %v911
    %982 = vmatprep.subr.bf16.mxu0 0
    %983 = vmatpush1.bf16.msra.mxu0 %v912
    %984 = vmatprep.subr.bf16.mxu0 0
    %985 = vmatpush1.bf16.msra.mxu0 %v913
    %986 = vmatprep.subr.bf16.mxu0 0
    %987 = vmatpush1.bf16.msra.mxu0 %v914
    %988 = vmatprep.subr.bf16.mxu0 0
    %989 = vmatpush1.bf16.msra.mxu0 %v915
    %990 = vmatprep.subr.bf16.mxu0 0
    %991 = vmatpush1.bf16.msra.mxu0 %v916
    %992 = vmatprep.subr.bf16.mxu0 0
    %993 = vmatpush1.bf16.msra.mxu0 %v917
    %994 = vmatprep.subr.bf16.mxu0 0
    %995 = vmatpush1.bf16.msra.mxu0 %v918
    %996 = vmatprep.subr.bf16.mxu0 0
    %997 = vmatpush1.bf16.msra.mxu0 %v919
    %998 = vmatprep.subr.bf16.mxu0 0
    %999 = vmatpush1.bf16.msra.mxu0 %v920
    %1000 = vmatprep.subr.bf16.mxu0 0
    %1001 = vmatpush1.bf16.msra.mxu0 %v921
    %1002 = vmatprep.mubr.bf16.mxu0 %v711
    %1003 = vmatmul.mubr.bf16.gmra.mrb[0].mxu0 %v710
    %v1004 = vpop.f32.mrb[0].mxu0
    %v1005 = vadd.f32 0.0, %v1004
    %v1006 = vpop.f32.mrb[0].mxu0
    %v1007 = vpop.f32.mrb[0].mxu0
    %v1008 = vadd.f32 0.0, %v1007
    %v1009 = vpop.f32.mrb[0].mxu0
    %1010 = vdwg.mxu0
    %1011 = vmatprep.subr.bf16.mxu0 0
    %1012 = vmatpush1.bf16.msra.mxu0 %v922
    %1013 = vmatprep.subr.bf16.mxu0 0
    %1014 = vmatpush1.bf16.msra.mxu0 %v923
    %1015 = vmatprep.subr.bf16.mxu0 0
    %1016 = vmatpush1.bf16.msra.mxu0 %v924
    %1017 = vmatprep.subr.bf16.mxu0 0
    %1018 = vmatpush1.bf16.msra.mxu0 %v925
    %1019 = vmatprep.subr.bf16.mxu0 0
    %1020 = vmatpush1.bf16.msra.mxu0 %v926
    %1021 = vmatprep.subr.bf16.mxu0 0
    %1022 = vmatpush1.bf16.msra.mxu0 %v927
    %1023 = vmatprep.subr.bf16.mxu0 0
    %1024 = vmatpush1.bf16.msra.mxu0 %v928
    %1025 = vmatprep.subr.bf16.mxu0 0
    %1026 = vmatpush1.bf16.msra.mxu0 %v929
    %1027 = vmatprep.subr.bf16.mxu0 0
    %1028 = vmatpush1.bf16.msra.mxu0 %v930
    %1029 = vmatprep.subr.bf16.mxu0 0
    %1030 = vmatpush1.bf16.msra.mxu0 %v931
    %1031 = vmatprep.subr.bf16.mxu0 0
    %1032 = vmatpush1.bf16.msra.mxu0 %v932
    %1033 = vmatprep.subr.bf16.mxu0 0
    %1034 = vmatpush1.bf16.msra.mxu0 %v933
    %1035 = vmatprep.subr.bf16.mxu0 0
    %1036 = vmatpush1.bf16.msra.mxu0 %v934
    %1037 = vmatprep.subr.bf16.mxu0 0
    %1038 = vmatpush1.bf16.msra.mxu0 %v935
    %1039 = vmatprep.subr.bf16.mxu0 0
    %1040 = vmatpush1.bf16.msra.mxu0 %v936
    %1041 = vmatprep.subr.bf16.mxu0 0
    %1042 = vmatpush1.bf16.msra.mxu0 %v937
    %1043 = vmatprep.mubr.bf16.mxu0 %v713
    %1044 = vmatmul.mubr.bf16.gmra.mrb[0].mxu0 %v712
    %v1045 = vpop.f32.mrb[0].mxu0
    %v1046 = vadd.f32 %v1005, %v1045
    %v1047 = vpop.f32.mrb[0].mxu0
    %v1048 = vpop.f32.mrb[0].mxu0
    %v1049 = vadd.f32 %v1008, %v1048
    %v1050 = vpop.f32.mrb[0].mxu0
    %1051 = vdwg.mxu0
    %v1052 = vadd.f32 %v708, %v1046
    %v1053 = vadd.f32 %v709, %v1049
    %1054 = vst [vmem:[#allocation2] sm:$0xff] %v1052
    %1055 = vst [vmem:[#allocation2 + $0x8] sm:$0xff] %v1053
    // Predicated region
    $region38: #{tpu_custom_call.1} parent=1 // pred_check
      %p1056 = pneg %p74
    $region39: #{tpu_custom_call.1} parent=1 // pred_check_branch
      %1058 = sbr.rel (%p1056) target = $region41
    $region40: #{tpu_custom_call.1} parent=1 // pred_region
      %v1059 = vld [vmem:[#allocation2] sm:$0xff]
      %v1060 = vld [vmem:[#allocation2 + $0x8] sm:$0xff]
      %v1061 = vpack.c.bf16 %v1060, %v1059
      %v1063 = vunpack.c.l.b16 %v1061
      %v1064 = vunpack.c.h.b16 %v1061
      %v1065 = vpack.c.b16 %v1063, %v1063
      %v1066 = vpack.c.b16 %v1064, %v1064
      %1069 = vst [vmem:[#allocation11] sm:$0xf] %v1065
      %1070 = vst [vmem:[#allocation11 + $0x4] sm:$0xf] %v1066
    $region41: #{tpu_custom_call.1} parent=1 // pred_fallthru
      _
    // Predicated region
    $region42: #{tpu_custom_call.1} parent=1 // pred_check
      _
    $region43: #{tpu_custom_call.1} parent=1 // pred_check_branch
      %1072 = sbr.rel (0) target = $region45
    $region44: #{tpu_custom_call.1} parent=1 // pred_region
      %s1074 = ssub.s32 128, 128
      %1075 = vsyncadd [#allocation5], %s1074
      %s1076 = sshll.u32 [#allocation11], 4
      %s1077 = int_to_ptr.vmem [resolvable:$true] %s1076
      %1082 = dma.vmem_to_hbm [thread:$0]  %s1077, 128, %s4, [#allocation5], 64, 64, 4
    $region45: #{tpu_custom_call.1} parent=1 // pred_fallthru
      _
    // Predicated region
    $region46: #{tpu_custom_call.1} parent=1 // pred_check
      _
    $region47: #{tpu_custom_call.1} parent=1 // pred_check_branch
      %1084 = sbr.rel (0) target = $region49
    $region48: #{tpu_custom_call.1} parent=1 // pred_region
      %1085 = dma.done [#allocation5], 128
    $region49: #{tpu_custom_call.1} parent=1 // pred_fallthru
      _
    %1086 = vsyncpa [#allocation4], 1
    %1087 = vsyncpa [#allocation7], 1
    %1088 = vsyncpa [#allocation10], 1
    %1089 = vsyncpa [#allocation5], 1

</llo_original>
